<compile_context>
chip_gen: v5e
topology: v5e:2x2
jax: 0.10.0
libtpu: 0.0.40
codegen_flags: <defaults>
</compile_context>

<pallas_src>
import jax
import jax.numpy as jnp
from jax.experimental import pallas as pl
from jax.experimental.pallas import tpu as pltpu


_TILE_N_MAX = 1024   # rows per tile (>=512 reaches ~85% of HBM roofline)
_TILE_D_MAX = 2048   # lane tile; only used when dim is very large & 128-aligned


def _round_up(x, m):
    return ((x + m - 1) // m) * m


def rtg_embed_kernel(x_ref, w_ref, b_ref, o_ref):
    # x_ref: (tile_n, 1), w_ref/b_ref: (1, tile_d), o_ref: (tile_n, tile_d)
    # K == 1 -> broadcasted FMA on the VPU; deliberately NOT an MXU matmul
    # (a (N,1)x(1,D) dot would waste 127/128 of the systolic array).
    x = x_ref[...].astype(jnp.float32)
    w = w_ref[...].astype(jnp.float32)
    b = b_ref[...].astype(jnp.float32)
    o_ref[...] = (x * w + b).astype(o_ref.dtype)


def rtg_embed(rtg, weight, bias, *, out_dtype=None):
    """rtg: (..., 1), weight: (dim, 1) (PyTorch layout), bias: (dim,) -> (..., dim)."""
    *lead, in_dim = rtg.shape
    assert in_dim == 1, "RTGEmbed expects last dim == 1"
    dim = weight.shape[0]
    out_dtype = jnp.dtype(out_dtype) if out_dtype is not None else jnp.dtype(rtg.dtype)

    n = 1
    for s in lead:
        n *= s
    n = max(n, 1)

    # Dtype passthrough: keep the caller's dtype on the HBM side (this kernel
    # is bound by HBM bytes moved); f32 math happens inside the kernel only.
    x2d = rtg.reshape(n, 1)
    w2d = weight.reshape(dim, 1).T    # (1, dim)
    b2d = bias.reshape(1, dim)        # (1, dim)

    # Row tile: >=512 rows when possible, multiple of 8 sublanes, shrunk for
    # tiny inputs.  Ragged last tile is handled by the cdiv grid (OOB writes
    # are masked; the op is elementwise so OOB-read garbage is never stored).
    tile_n = min(_TILE_N_MAX, _round_up(n, 8))
    # Lane tile: keep full D (lane-dense, unmasked vst) unless D is very large,
    # in which case tile along 128-aligned chunks to bound VMEM on v7x.
    if dim > _TILE_D_MAX and dim % 128 == 0:
        tile_d = _TILE_D_MAX
    else:
        tile_d = dim

    grid = (pl.cdiv(n, tile_n), pl.cdiv(dim, tile_d))

    out = pl.pallas_call(
        rtg_embed_kernel,
        out_shape=jax.ShapeDtypeStruct((n, dim), out_dtype),
        grid=grid,
        in_specs=[
            pl.BlockSpec((tile_n, 1), lambda i, j: (i, 0)),
            pl.BlockSpec((1, tile_d), lambda i, j: (0, j)),   # resident across i
            pl.BlockSpec((1, tile_d), lambda i, j: (0, j)),   # resident across i
        ],
        out_specs=pl.BlockSpec((tile_n, tile_d), lambda i, j: (i, j)),
        compiler_params=pltpu.CompilerParams(
            # Both grid axes are fully independent row/lane tiles.
            dimension_semantics=("parallel", "parallel"),
            # Explicit scoped-VMEM budget; safe on v7x (64 MiB physical VMEM)
            # and ample for tile_n=1024 x tile_d<=2048 double-buffered f32.
            vmem_limit_bytes=32 * 1024 * 1024,
        ),
        cost_estimate=pl.CostEstimate(
            flops=2 * n * dim,
            transcendentals=0,
            bytes_accessed=(n * x2d.dtype.itemsize
                            + 2 * dim * w2d.dtype.itemsize
                            + n * dim * out_dtype.itemsize),
        ),
    )(x2d, w2d, b2d)

    return out.reshape(*lead, dim)


if __name__ == "__main__":
    key = jax.random.PRNGKey(0)
    k_rtg, k_w, k_b, k_rtg2 = jax.random.split(key, 4)

    # Small, module-consistent shapes: batch=2, seq=8, rtg feature dim=1,
    # hidden dim=128 (multiple of the 128-lane vreg width).
    batch, seq, dim = 2, 8, 128
    rtg = jax.random.normal(k_rtg, (batch, seq, 1), dtype=jnp.float32)
    # Deterministic synthetic nn.Linear(1, dim) params (PyTorch shape conv):
    weight = jax.random.normal(k_w, (dim, 1), dtype=jnp.float32) * 0.1  # (out, in)
    bias = jax.random.normal(k_b, (dim,), dtype=jnp.float32) * 0.1

    out = jax.block_until_ready(rtg_embed(rtg, weight, bias))
    ref = jnp.einsum("bti,oi->bto", rtg, weight) + bias
    assert out.shape == (batch, seq, dim), out.shape
    assert out.dtype == rtg.dtype, out.dtype
    assert jnp.allclose(out, ref, atol=1e-5, rtol=1e-5), "mismatch vs reference"

    # Second check: exercises the row grid (n > tile_n) with a ragged last tile.
    b2, s2 = 3, 400   # n = 1200 = 1024 + 176
    rtg2 = jax.random.normal(k_rtg2, (b2, s2, 1), dtype=jnp.float32)
    out2 = jax.block_until_ready(rtg_embed(rtg2, weight, bias))
    ref2 = jnp.einsum("bti,oi->bto", rtg2, weight) + bias
    assert out2.shape == (b2, s2, dim), out2.shape
    assert jnp.allclose(out2, ref2, atol=1e-5, rtol=1e-5), "mismatch vs reference (tiled)"

    print("KERNEL_OK")
</pallas_src>

<mosaic_0001>
module attributes {stable_mosaic.version = 11 : i64} {
  func.func @rtg_embed_kernel(%arg0: i32, %arg1: i32, %arg2: memref<16x1xf32, #tpu.memory_space<vmem>>, %arg3: memref<1x128xf32, #tpu.memory_space<vmem>>, %arg4: memref<1x128xf32, #tpu.memory_space<vmem>>, %arg5: memref<16x128xf32, #tpu.memory_space<vmem>>) attributes {dimension_semantics = [#tpu.dimension_semantics<parallel>, #tpu.dimension_semantics<parallel>], iteration_bounds = array<i64: 1, 1>, scalar_prefetch = 0 : i64, scratch_operands = 0 : i64, tpu.core_type = #tpu.core_type<tc>, window_params = [{transform_indices = @transform_0, window_bounds = array<i64: 16, 1>}, {transform_indices = @transform_1, window_bounds = array<i64: 1, 128>}, {transform_indices = @transform_2, window_bounds = array<i64: 1, 128>}, {transform_indices = @transform_3, window_bounds = array<i64: 16, 128>}]} {
    %c0 = arith.constant 0 : index
    %c0_0 = arith.constant 0 : index
    %0 = vector.load %arg2[%c0, %c0_0] : memref<16x1xf32, #tpu.memory_space<vmem>>, vector<16x1xf32>
    %c0_1 = arith.constant 0 : index
    %c0_2 = arith.constant 0 : index
    %1 = vector.load %arg3[%c0_1, %c0_2] : memref<1x128xf32, #tpu.memory_space<vmem>>, vector<1x128xf32>
    %c0_3 = arith.constant 0 : index
    %c0_4 = arith.constant 0 : index
    %2 = vector.load %arg4[%c0_3, %c0_4] : memref<1x128xf32, #tpu.memory_space<vmem>>, vector<1x128xf32>
    %3 = vector.broadcast %0 : vector<16x1xf32> to vector<16x128xf32>
    %4 = vector.broadcast %1 : vector<1x128xf32> to vector<16x128xf32>
    %5 = arith.mulf %3, %4 : vector<16x128xf32>
    %6 = vector.broadcast %2 : vector<1x128xf32> to vector<16x128xf32>
    %7 = arith.addf %5, %6 : vector<16x128xf32>
    %c0_5 = arith.constant 0 : index
    %c0_6 = arith.constant 0 : index
    %8 = vector.load %arg5[%c0_5, %c0_6] : memref<16x128xf32, #tpu.memory_space<vmem>>, vector<16x128xf32>
    tpu.vector_store %arg5[%c0_5, %c0_6], %7 {strides = array<i32>} : memref<16x128xf32, #tpu.memory_space<vmem>>, vector<16x128xf32>,
    return
  }
  func.func @transform_0(%arg0: i32, %arg1: i32) -> (i32, i32) {
    %c0_i32 = arith.constant 0 : i32
    %c0_i32_0 = arith.constant 0 : i32
    return %arg0, %c0_i32 : i32, i32
  }
  func.func @transform_1(%arg0: i32, %arg1: i32) -> (i32, i32) {
    %c0_i32 = arith.constant 0 : i32
    %c0_i32_0 = arith.constant 0 : i32
    return %c0_i32, %arg1 : i32, i32
  }
  func.func @transform_2(%arg0: i32, %arg1: i32) -> (i32, i32) {
    %c0_i32 = arith.constant 0 : i32
    %c0_i32_0 = arith.constant 0 : i32
    return %c0_i32, %arg1 : i32, i32
  }
  func.func @transform_3(%arg0: i32, %arg1: i32) -> (i32, i32) {
    %c0_i32 = arith.constant 0 : i32
    return %arg0, %arg1 : i32, i32
  }
}

</mosaic_0001>

<llo_original>
// kernel: tpu_custom_call.1
$region0: #{tpu_custom_call.1}
  #allocation0 [shape = 'u32[]', space=smem, size = 0x4, offset = 0x4, fixed_abs, tag = 'smem constant byte address 0x4 - core index']
  #allocation1 [shape = 'u32[72,128]{1,0:T(1,128)}', space=vmem, size = 0x9000, scoped, tag = 'internal scratch']
  %s0 = inlined_call_operand.vmem [shape: f32[16,1], index: 0, kind: input, shape index: {}]
  %s1 = inlined_call_operand.vmem [shape: f32[1,128], index: 1, kind: input, shape index: {}]
  %s2 = inlined_call_operand.vmem [shape: f32[1,128], index: 2, kind: input, shape index: {}]
  %s3 = inlined_call_operand.hbm [shape: f32[16,128], index: 3, kind: output, shape index: {}]
  %s4 = sld [smem:[#allocation0]]
  $region22: #{tpu_custom_call.1} parent=0
    _
  %s6 = ssub.s32 1, %s4
  %s7 = scalar_select 0, %s6, %s4
  $region1: #{tpu_custom_call.1} parent=0
    #allocation2 [shape = 'u8[8192]{0}', space=vmem, size = 0x2000, scoped, tag = 'output window, operand 0, single buffered']
    #allocation3 [shape = 's32[1]{0}', space=sflag, size = 0x4, scoped, tag = 'scoped memory for tpu_custom_call.1']
    %8 = vsyncpa [#allocation3], 0
    // Predicated region
    $region2: #{tpu_custom_call.1} parent=1 // pred_check
      _
    $region3: #{tpu_custom_call.1} parent=1 // pred_check_branch
      %10 = sbr.rel (0) target = $region5
    $region4: #{tpu_custom_call.1} parent=1 // pred_region
      _
    $region5: #{tpu_custom_call.1} parent=1 // pred_fallthru
      _
    // Predicated region
    $region6: #{tpu_custom_call.1} parent=1 // pred_check
      _
    $region7: #{tpu_custom_call.1} parent=1 // pred_check_branch
      %12 = sbr.rel (0) target = $region9
    $region8: #{tpu_custom_call.1} parent=1 // pred_region
      _
    $region9: #{tpu_custom_call.1} parent=1 // pred_fallthru
      _
    // Predicated region
    $region10: #{tpu_custom_call.1} parent=1 // pred_check
      _
    $region11: #{tpu_custom_call.1} parent=1 // pred_check_branch
      %14 = sbr.rel (0) target = $region13
    $region12: #{tpu_custom_call.1} parent=1 // pred_region
      _
    $region13: #{tpu_custom_call.1} parent=1 // pred_fallthru
      _
    %v15 = vld [vmem:[%s0] sm:$0xff]
    %v16 = vld [vmem:[%s0 + $0x8] sm:$0xff]
    %v17 = vld [vmem:[%s1] sm:$0x1]
    %v18 = vld [vmem:[%s2] sm:$0x1]
    %20 = vset.pattern.permute.xlu0 0
    %21 = vperm.xlu0 %20, %v15
    %v22 = vpop.permute.xlu0 %21
    %25 = vset.pattern.permute.xlu0 0
    %26 = vperm.xlu0 %25, %v16
    %v27 = vpop.permute.xlu0 %26
    %v30 = vperm.slane %v17, 0
    %v32 = vmul.f32 %v22, %v30
    %v33 = vmul.f32 %v27, %v30
    %v35 = vperm.slane %v18, 0
    %v37 = vadd.f32 %v32, %v35
    %v38 = vadd.f32 %v33, %v35
    %39 = vst [vmem:[#allocation2] sm:$0xff] %v37
    %40 = vst [vmem:[#allocation2 + $0x8] sm:$0xff] %v38
    // Predicated region
    $region14: #{tpu_custom_call.1} parent=1 // pred_check
      _
    $region15: #{tpu_custom_call.1} parent=1 // pred_check_branch
      %42 = sbr.rel (0) target = $region17
    $region16: #{tpu_custom_call.1} parent=1 // pred_region
      %44 = vsyncadd [#allocation3], 0
      %s45 = sshll.u32 [#allocation2], 4
      %s46 = int_to_ptr.vmem [resolvable:$true] %s45
      %s47 = sshll.u32 %s3, 4
      %s48 = int_to_ptr.hbm [resolvable:$true] %s47
      %53 = dma.vmem_to_hbm [thread:$0]  %s46, 256, %s48, [#allocation3], 128, 128, 8
    $region17: #{tpu_custom_call.1} parent=1 // pred_fallthru
      _
    // Predicated region
    $region18: #{tpu_custom_call.1} parent=1 // pred_check
      _
    $region19: #{tpu_custom_call.1} parent=1 // pred_check_branch
      %55 = sbr.rel (0) target = $region21
    $region20: #{tpu_custom_call.1} parent=1 // pred_region
      %57 = dma.done [#allocation3], 256
    $region21: #{tpu_custom_call.1} parent=1 // pred_fallthru
      _
    %58 = vsyncpa [#allocation3], 1

</llo_original>
